<compile_context>
chip_gen: v7x
topology: tpu7x:2x2x1
jax: 0.10.0
libtpu: 0.0.40
codegen_flags: <defaults>
</compile_context>

<pallas_src>
import math
from functools import partial

import jax
import jax.numpy as jnp
from jax.experimental import pallas as pl
from jax.experimental.pallas import tpu as pltpu

LANES = 128
# Per-buffer tile budget. Input + aliased output, each double-buffered,
# keeps the footprint ~8 MiB — safe on every TPU generation.
_TARGET_TILE_BYTES = 2 * 1024 * 1024
# Lane-dense slab widths to try (all multiples of 128), widest first.
_WIDTH_CANDIDATES = (8192, 4096, 2048, 1024, 512, 256, 128)


def _resolve_size(size, numel):
    """PyTorch-style size resolution, including a single -1 wildcard."""
    size = tuple(int(s) for s in size)
    if size.count(-1) > 1:
        raise ValueError("only one dimension can be inferred")
    if -1 in size:
        known = 1
        for s in size:
            if s != -1:
                known *= s
        if known == 0 or numel % known != 0:
            raise ValueError(f"shape {size} is invalid for input of size {numel}")
        size = tuple(numel // known if s == -1 else s for s in size)
    if math.prod(size) != numel:
        raise ValueError(f"shape {size} is invalid for input of size {numel}")
    return size


def _sublane_min(dtype):
    """Minimum second-to-last tile dim: 8 (32-bit), 16 (16-bit), 32 (8-bit)."""
    itemsize = jnp.dtype(dtype).itemsize
    return max(8, 32 // itemsize)


def _copy_kernel(x_ref, o_ref):
    # Identity copy of the current (block_rows, width) tile.
    o_ref[...] = x_ref[...]


@partial(jax.jit, static_argnames=("size",))
def view_pallas(x, size):
    """Equivalent of `x.view(size)` with the element copy done in Pallas."""
    numel = x.size
    out_shape = _resolve_size(size, numel)
    itemsize = jnp.dtype(x.dtype).itemsize
    sub_min = _sublane_min(x.dtype)

    flat = x.reshape(-1)

    # Fast path: no padding when numel is already a multiple of 128 (the
    # common case for NCHW activations). Padding + trailing slice costs two
    # extra full-tensor HBM passes, so only take it when strictly needed.
    padded_len = pl.cdiv(numel, LANES) * LANES
    needs_pad = padded_len != numel
    if needs_pad:
        flat = jnp.pad(flat, (0, padded_len - numel))

    # Lane-dense slab: widest last dim (multiple of 128) that divides exactly.
    width = next(w for w in _WIDTH_CANDIDATES if padded_len % w == 0)
    rows = padded_len // width
    slab = flat.reshape(rows, width)

    # Dtype-aware block rows sized against the VMEM budget.
    target_rows = max(
        sub_min,
        (_TARGET_TILE_BYTES // (width * itemsize)) // sub_min * sub_min,
    )
    if rows <= target_rows:
        block_rows = rows  # full-extent block along rows (always legal)
    else:
        block_rows = target_rows  # multiple of the dtype's sublane minimum
    # pl.cdiv + Pallas boundary masking handle a ragged tail block correctly.
    grid = (pl.cdiv(rows, block_rows),)

    out_slab = pl.pallas_call(
        _copy_kernel,
        out_shape=jax.ShapeDtypeStruct((rows, width), x.dtype),
        grid_spec=pltpu.PrefetchScalarGridSpec(
            num_scalar_prefetch=0,
            grid=grid,
            in_specs=[pl.BlockSpec((block_rows, width), lambda i: (i, 0))],
            out_specs=pl.BlockSpec((block_rows, width), lambda i: (i, 0)),
        ),
        compiler_params=pltpu.CompilerParams(
            dimension_semantics=("parallel",),
        ),
        cost_estimate=pl.CostEstimate(
            flops=0,
            transcendentals=0,
            bytes_accessed=2 * numel * itemsize,
        ),
        # Identity copy with matching shape/dtype: alias input 0 -> output 0.
        input_output_aliases={0: 0},
    )(slab)

    if needs_pad:
        return out_slab.reshape(-1)[:numel].reshape(out_shape)
    return out_slab.reshape(out_shape)


class ViewPallas:
    """Mirror of the PyTorch `View(nn.Module)` — no parameters."""

    def __init__(self, size):
        self.size = tuple(size)

    def __call__(self, tensor):
        return view_pallas(tensor, self.size)
    # TODO(synk): true PyTorch view aliasing (zero-copy metadata change) has no
    # Pallas equivalent; this performs one (aliased) HBM copy.


if __name__ == "__main__":
    key = jax.random.PRNGKey(0)
    # NCHW input, small shapes: batch=2, channels=4, spatial=16x16.
    x = jax.random.normal(key, (2, 4, 16, 16), dtype=jnp.float32)

    # View to (batch, -1), i.e. (2, 1024) — the typical flatten-for-FC use.
    module = ViewPallas((2, -1))
    y = module(x)
    y = jax.block_until_ready(y)

    ref = x.reshape(2, -1)
    assert y.shape == ref.shape, (y.shape, ref.shape)
    assert y.dtype == ref.dtype, (y.dtype, ref.dtype)
    assert bool(jnp.array_equal(y, ref)), "mismatch vs reference reshape (f32)"

    # Packed-dtype path (bf16 -> 16-sublane minimum / wide lane slab).
    xb = x.astype(jnp.bfloat16)
    yb = jax.block_until_ready(ViewPallas((-1,))(xb))
    refb = xb.reshape(-1)
    assert yb.shape == refb.shape and yb.dtype == refb.dtype
    assert bool(jnp.array_equal(yb, refb)), "mismatch vs reference reshape (bf16)"

    print("KERNEL_OK")
</pallas_src>

<mosaic_0001>
module attributes {stable_mosaic.version = 11 : i64} {
  func.func @_copy_kernel(%arg0: i32, %arg1: memref<1x2048xf32, #tpu.memory_space<vmem>>, %arg2: memref<1x2048xf32, #tpu.memory_space<vmem>>) attributes {dimension_semantics = [#tpu.dimension_semantics<parallel>], iteration_bounds = array<i64: 1>, scalar_prefetch = 0 : i64, scratch_operands = 0 : i64, tpu.core_type = #tpu.core_type<tc>, window_params = [{transform_indices = @transform_0, window_bounds = array<i64: 1, 2048>}, {transform_indices = @transform_1, window_bounds = array<i64: 1, 2048>}]} {
    %c0 = arith.constant 0 : index
    %c0_0 = arith.constant 0 : index
    %0 = vector.load %arg1[%c0, %c0_0] : memref<1x2048xf32, #tpu.memory_space<vmem>>, vector<1x2048xf32>
    %c0_1 = arith.constant 0 : index
    %c0_2 = arith.constant 0 : index
    %1 = vector.load %arg2[%c0_1, %c0_2] : memref<1x2048xf32, #tpu.memory_space<vmem>>, vector<1x2048xf32>
    tpu.vector_store %arg2[%c0_1, %c0_2], %0 {strides = array<i32>} : memref<1x2048xf32, #tpu.memory_space<vmem>>, vector<1x2048xf32>,
    return
  }
  func.func @transform_0(%arg0: i32) -> (i32, i32) {
    %c0_i32 = arith.constant 0 : i32
    %c0_i32_0 = arith.constant 0 : i32
    return %arg0, %c0_i32 : i32, i32
  }
  func.func @transform_1(%arg0: i32) -> (i32, i32) {
    %c0_i32 = arith.constant 0 : i32
    %c0_i32_0 = arith.constant 0 : i32
    return %arg0, %c0_i32 : i32, i32
  }
}

</mosaic_0001>

<llo_original>
// kernel: view_pallas.1
$region0: #{view_pallas.1}
  #allocation0 [shape = 'u32[]', space=smem, size = 0x4, offset = 0x4, fixed_abs, tag = 'smem constant byte address 0x4 - core index']
  #allocation1 [shape = 'u32[144,128]{1,0:T(1,128)}', space=vmem, size = 0x12000, scoped, tag = 'internal scratch']
  %s0 = inlined_call_operand.vmem [shape: f32[1,2048], index: 0, kind: input, shape index: {}, may-alias: {0,1}]
  %s1 = inlined_call_operand.vmem [shape: f32[1,2048], index: 1, kind: output, shape index: {}, may-alias: {0,1}]
  %s2 = sld [smem:[#allocation0]]
  $region14: #{view_pallas.1} parent=0
    _
  %s4 = ssub.s32 1, %s2
  %s5 = scalar_select 0, %s4, %s2
  // Predicated region
  $region2: #{view_pallas.1} parent=0 // pred_check
    _
  $region3: #{view_pallas.1} parent=0 // pred_check_branch
    %7 = sbr.rel (0) target = $region5
  $region4: #{view_pallas.1} parent=0 // pred_region
    _
  $region5: #{view_pallas.1} parent=0 // pred_fallthru
    _
  %v8 = vld [vmem:[%s0] sm:$0xff]
  %v9 = vld [vmem:[%s0 + $0x8] sm:$0xff]
  %10 = vst [vmem:[%s1] sm:$0xff] %v8
  %11 = vst [vmem:[%s1 + $0x8] sm:$0xff] %v9
  // Predicated region
  $region6: #{view_pallas.1} parent=0 // pred_check
    _
  $region7: #{view_pallas.1} parent=0 // pred_check_branch
    %13 = sbr.rel (0) target = $region9
  $region8: #{view_pallas.1} parent=0 // pred_region
    _
  $region9: #{view_pallas.1} parent=0 // pred_fallthru
    _
  // Predicated region
  $region10: #{view_pallas.1} parent=0 // pred_check
    _
  $region11: #{view_pallas.1} parent=0 // pred_check_branch
    %15 = sbr.rel (0) target = $region13
  $region12: #{view_pallas.1} parent=0 // pred_region
    _
  $region13: #{view_pallas.1} parent=0 // pred_fallthru
    _

</llo_original>
